<compile_context>
chip_gen: v7x
topology: tpu7x:2x2x1
jax: 0.10.0
libtpu: 0.0.40
codegen_flags: <defaults>
</compile_context>

<pallas_src>
import functools

import jax
import jax.numpy as jnp
from jax import lax
from jax.experimental import pallas as pl
from jax.experimental.pallas import tpu as pltpu

_BCE_EPS = 1e-7
_N_COLS_OUT = 10   # 9 per-graph sums + 1 global BCE sum (stored at row 0)


def _seg_kernel(batch_ref, pred_ref, target_ref, pos_ref, out_ref, *,
                n_cols, num_graphs, cross_entropy, threshold_sum):
    """Accumulate per-graph sums over one (8, Tc) column chunk of nodes.

    Output columns (per graph b):
      0 sum(pred*target)   1 sum(pred | pred_flag)   2 sum(target)
      3:6 sum(pos * (pred | pred_flag))   6:9 sum(pos * target)
      9 (row 0 only) sum(bce)  [when cross_entropy]
    """
    k = pl.program_id(0)
    tc = pred_ref.shape[1]

    @pl.when(k == 0)
    def _init():
        out_ref[...] = jnp.zeros_like(out_ref)

    # Ragged last block: columns beyond n_cols contain garbage -> give them a
    # sentinel graph id (== num_graphs) that never matches a real graph.
    col = k * tc + lax.broadcasted_iota(jnp.int32, (8, tc), 1)
    valid = col < n_cols
    b_ids = jnp.where(valid, batch_ref[...], jnp.int32(num_graphs))

    pred = pred_ref[...]
    target = target_ref[...]
    px = pos_ref[0:8, :]
    py = pos_ref[8:16, :]
    pz = pos_ref[16:24, :]

    if threshold_sum:
        pden = jnp.where(pred > 0.5, jnp.float32(1.0), jnp.float32(1e-10))
    else:
        pden = pred

    feats = (pred * target, pden, target,
             px * pden, py * pden, pz * pden,
             px * target, py * target, pz * target)

    # Lane-dense masked accumulation (select kills NaN/Inf from garbage lanes).
    for b in range(num_graphs):
        m = b_ids == b
        for f, feat in enumerate(feats):
            s = jnp.sum(jnp.where(m, feat, 0.0))
            out_ref[b:b + 1, f:f + 1] = out_ref[b:b + 1, f:f + 1] + s

    if cross_entropy:
        p = jnp.clip(pred, _BCE_EPS, 1.0 - _BCE_EPS)
        bce = -jnp.log(jnp.where(target > 0.5, p, 1.0 - p))
        s = jnp.sum(jnp.where(valid, bce, 0.0))
        out_ref[0:1, 9:10] = out_ref[0:1, 9:10] + s


def _tail_segment_sums(pred_t, target_t, batch_t, pos_t, num_graphs,
                       cross_entropy, threshold_sum):
    """Per-graph sums for the <=7 leftover nodes (pure JAX)."""
    if threshold_sum:
        pden = jnp.where(pred_t > 0.5, 1.0, 1e-10)
    else:
        pden = pred_t
    feats = jnp.stack(
        [pred_t * target_t, pden, target_t,
         pos_t[:, 0] * pden, pos_t[:, 1] * pden, pos_t[:, 2] * pden,
         pos_t[:, 0] * target_t, pos_t[:, 1] * target_t, pos_t[:, 2] * target_t],
        axis=1)                                                   # (r, 9)
    seg = jax.ops.segment_sum(feats, batch_t, num_segments=num_graphs)
    if cross_entropy:
        p = jnp.clip(pred_t, _BCE_EPS, 1.0 - _BCE_EPS)
        bce = -jnp.log(jnp.where(target_t > 0.5, p, 1.0 - p))
        bce_sum = jnp.sum(bce)
    else:
        bce_sum = jnp.float32(0.0)
    return seg, bce_sum


def segmentation_loss(pred, target, batch, pos, num_graphs, alpha=1.0, beta=1.0,
                      cross_entropy=False, threshold_sum=False, smooth=1.0,
                      lanes_per_step=8192):
    """Mirrors segmentation_loss_func.forward.

    Returns (total, dice_loss, pocket_center_loss, cross_entropy_loss).
    `num_graphs` must be static (PyTorch derives it from torch.unique(batch)).
    """
    pred = pred.reshape(-1).astype(jnp.float32)
    target = target.reshape(-1).astype(jnp.float32)
    batch = batch.reshape(-1).astype(jnp.int32)
    pos = pos.astype(jnp.float32)
    N = int(pred.shape[0])
    B = int(num_graphs)

    n8 = N // 8
    m = n8 * 8                 # nodes handled by the kernel
    rem = N - m                # <=7 leftover nodes handled in JAX glue

    if n8 > 0:
        # Free row-major reshapes (a copy only happens when rem > 0, for the
        # [:m] slice); pos needs one transpose to become lane-major.
        pred2d = pred[:m].reshape(8, n8)
        target2d = target[:m].reshape(8, n8)
        batch2d = batch[:m].reshape(8, n8)
        pos24 = jnp.transpose(pos[:m]).reshape(24, n8)   # rows: 8x x, 8x y, 8x z

        if n8 <= lanes_per_step:
            tc = n8                                      # single full-width block
        else:
            tc = max(128, (int(lanes_per_step) // 128) * 128)
        gsteps = -(-n8 // tc)

        block_bytes = (3 * 8 + 24) * tc * 4              # one input buffer set
        est = 2 * block_bytes + 32 * 8 * tc * 4 + (2 << 20)
        vmem_limit = int(min(48 * 2 ** 20, max(24 * 2 ** 20, est)))

        kernel = functools.partial(
            _seg_kernel, n_cols=n8, num_graphs=B,
            cross_entropy=bool(cross_entropy),
            threshold_sum=bool(threshold_sum))

        seg = pl.pallas_call(
            kernel,
            out_shape=jax.ShapeDtypeStruct((B, _N_COLS_OUT), jnp.float32),
            grid=(gsteps,),
            in_specs=[
                pl.BlockSpec((8, tc), lambda k: (0, k)),
                pl.BlockSpec((8, tc), lambda k: (0, k)),
                pl.BlockSpec((8, tc), lambda k: (0, k)),
                pl.BlockSpec((24, tc), lambda k: (0, k)),
            ],
            out_specs=pl.BlockSpec((B, _N_COLS_OUT), lambda k: (0, 0)),
            compiler_params=pltpu.CompilerParams(
                dimension_semantics=("arbitrary",),
                vmem_limit_bytes=vmem_limit),
        )(batch2d, pred2d, target2d, pos24)
    else:
        seg = jnp.zeros((B, _N_COLS_OUT), jnp.float32)

    if rem > 0:
        seg_tail, bce_tail = _tail_segment_sums(
            pred[m:], target[m:], batch[m:], pos[m:], B,
            cross_entropy, threshold_sum)
        seg9 = seg[:, :9] + seg_tail
        bce_sum = seg[0, 9] + bce_tail
    else:
        seg9 = seg[:, :9]
        bce_sum = seg[0, 9]

    s_pt = seg9[:, 0]
    s_p = seg9[:, 1]
    s_t = seg9[:, 2]
    s_pos_p = seg9[:, 3:6]
    s_pos_t = seg9[:, 6:9]

    # DiceLoss: sum over graphs of (1 - dice)
    dice = (2.0 * s_pt + smooth) / (s_p + s_t + smooth)
    dice_loss = jnp.sum(1.0 - dice)

    # PocketCenterLoss: binary targets -> count(target==1) == sum(target)
    target_center = s_pos_t / (s_t[:, None] + 1e-10)
    pred_center = s_pos_p / (s_p[:, None] + 1e-10)
    center_loss = jnp.sqrt(jnp.sum((target_center - pred_center) ** 2))

    if cross_entropy:
        ce = bce_sum / N          # BCELoss reduction='mean'
    else:
        ce = jnp.float32(0.0)

    total = alpha * dice_loss + beta * center_loss + ce
    return total, dice_loss, center_loss, ce


# ---------------- pure-JAX reference (for correctness checks) ----------------
def _reference(pred, target, batch, pos, num_graphs, alpha=1.0, beta=1.0,
               cross_entropy=False, threshold_sum=False, smooth=1.0):
    pred = pred.reshape(-1).astype(jnp.float32)
    target = target.reshape(-1).astype(jnp.float32)
    pos = pos.astype(jnp.float32)
    B = int(num_graphs)
    inter = jax.ops.segment_sum(pred * target, batch, B)
    st = jax.ops.segment_sum(target, batch, B)
    p_den = jnp.where(pred > 0.5, 1.0, 1e-10) if threshold_sum else pred
    sp = jax.ops.segment_sum(p_den, batch, B)
    dice_loss = jnp.sum(1.0 - (2.0 * inter + smooth) / (sp + st + smooth))
    spos_t = jax.ops.segment_sum(pos * target[:, None], batch, B)
    spos_p = jax.ops.segment_sum(pos * p_den[:, None], batch, B)
    tc = spos_t / (st[:, None] + 1e-10)
    pc = spos_p / (sp[:, None] + 1e-10)
    center = jnp.sqrt(jnp.sum((tc - pc) ** 2))
    if cross_entropy:
        p = jnp.clip(pred, _BCE_EPS, 1.0 - _BCE_EPS)
        ce = -jnp.mean(target * jnp.log(p) + (1.0 - target) * jnp.log(1.0 - p))
    else:
        ce = jnp.float32(0.0)
    total = alpha * dice_loss + beta * center + ce
    return total, dice_loss, center, ce


def _check(name, got, want, rtol=1e-4, atol=1e-4):
    for g, w, tag in zip(got, want, ("total", "dice", "center", "ce")):
        assert jnp.allclose(g, w, rtol=rtol, atol=atol), \
            f"{name}/{tag}: got {g}, want {w}"


if __name__ == "__main__":
    key = jax.random.PRNGKey(0)
    k1, k2, k3, k4 = jax.random.split(key, 4)

    # case 1: tiny, default flags (single block, no tail)
    N1, B1 = 64, 2
    pred1 = jax.random.uniform(k1, (N1,), jnp.float32, 1e-3, 1.0 - 1e-3)
    target1 = (jax.random.uniform(k2, (N1,)) > 0.5).astype(jnp.float32)
    pos1 = jax.random.normal(k3, (N1, 3), jnp.float32)
    batch1 = jnp.concatenate([jnp.zeros(N1 // 2, jnp.int32),
                              jnp.ones(N1 // 2, jnp.int32)])
    out1 = jax.block_until_ready(
        segmentation_loss(pred1, target1, batch1, pos1, num_graphs=B1))
    _check("case1", out1, _reference(pred1, target1, batch1, pos1, B1))
    assert jnp.allclose(out1[3], 0.0)   # CE off -> 0

    # shared data for the remaining cases: N not a multiple of 8 so the
    # leftover-node glue path is exercised, plus a ragged last block.
    N2, B2 = 2763, 7
    kk = jax.random.split(k4, 4)
    pred2 = jax.random.uniform(kk[0], (N2,), jnp.float32, 1e-3, 1.0 - 1e-3)
    target2 = (jax.random.uniform(kk[1], (N2,)) > 0.5).astype(jnp.float32)
    pos2 = jax.random.normal(kk[2], (N2, 3), jnp.float32)
    batch2 = jax.random.randint(kk[3], (N2,), 0, B2, jnp.int32)

    # case 2: cross_entropy=True, small tile -> multi-step grid + ragged block
    out2 = jax.block_until_ready(
        segmentation_loss(pred2, target2, batch2, pos2, num_graphs=B2,
                          cross_entropy=True, lanes_per_step=128))
    _check("case2", out2,
           _reference(pred2, target2, batch2, pos2, B2, cross_entropy=True))

    # case 3: threshold_sum=True branch, different tile size
    out3 = jax.block_until_ready(
        segmentation_loss(pred2, target2, batch2, pos2, num_graphs=B2,
                          threshold_sum=True, lanes_per_step=256))
    _check("case3", out3,
           _reference(pred2, target2, batch2, pos2, B2, threshold_sum=True))

    # case 4: default tile size (single full-width block), CE on
    out4 = jax.block_until_ready(
        segmentation_loss(pred2, target2, batch2, pos2, num_graphs=B2,
                          cross_entropy=True))
    _check("case4", out4,
           _reference(pred2, target2, batch2, pos2, B2, cross_entropy=True))

    print("KERNEL_OK")
</pallas_src>

<mosaic_0001>
module attributes {stable_mosaic.version = 11 : i64} {
  func.func @_seg_kernel(%arg0: i32, %arg1: memref<8x8xi32, #tpu.memory_space<vmem>>, %arg2: memref<8x8xf32, #tpu.memory_space<vmem>>, %arg3: memref<8x8xf32, #tpu.memory_space<vmem>>, %arg4: memref<24x8xf32, #tpu.memory_space<vmem>>, %arg5: memref<2x10xf32, #tpu.memory_space<vmem>>) attributes {dimension_semantics = [#tpu.dimension_semantics<arbitrary>], iteration_bounds = array<i64: 1>, scalar_prefetch = 0 : i64, scratch_operands = 0 : i64, tpu.core_type = #tpu.core_type<tc>, window_params = [{transform_indices = @transform_0, window_bounds = array<i64: 8, 8>}, {transform_indices = @transform_1, window_bounds = array<i64: 8, 8>}, {transform_indices = @transform_2, window_bounds = array<i64: 8, 8>}, {transform_indices = @transform_3, window_bounds = array<i64: 24, 8>}, {pipeline_mode = #tpu.pipeline_mode<synchronous>, transform_indices = @transform_4, window_bounds = array<i64: 2, 10>}]} {
    %c0_i32 = arith.constant 0 : i32
    %0 = arith.cmpi eq, %arg0, %c0_i32 : i32
    %1 = arith.extui %0 : i1 to i32
    %c0_i32_0 = arith.constant 0 : i32
    %2 = arith.cmpi ne, %1, %c0_i32_0 : i32
    scf.if %2 {
      %cst_112 = arith.constant 0.000000e+00 : f32
      %208 = vector.broadcast %cst_112 : f32 to vector<2x10xf32>
      %c0_113 = arith.constant 0 : index
      %c0_114 = arith.constant 0 : index
      %209 = vector.load %arg5[%c0_113, %c0_114] : memref<2x10xf32, #tpu.memory_space<vmem>>, vector<2x10xf32>
      tpu.vector_store %arg5[%c0_113, %c0_114], %208 {strides = array<i32>} : memref<2x10xf32, #tpu.memory_space<vmem>>, vector<2x10xf32>,
    } else {
    }
    %c8_i32 = arith.constant 8 : i32
    %3 = arith.muli %arg0, %c8_i32 : i32
    %4 = tpu.iota {dimensions = array<i32: 1>} : vector<8x8xi32>
    %5 = vector.broadcast %3 : i32 to vector<8x8xi32>
    %6 = arith.addi %5, %4 : vector<8x8xi32>
    %c8_i32_1 = arith.constant 8 : i32
    %7 = vector.broadcast %c8_i32_1 : i32 to vector<8x8xi32>
    %8 = arith.cmpi slt, %6, %7 : vector<8x8xi32>
    %c0 = arith.constant 0 : index
    %c0_2 = arith.constant 0 : index
    %9 = vector.load %arg1[%c0, %c0_2] : memref<8x8xi32, #tpu.memory_space<vmem>>, vector<8x8xi32>
    %c2_i32 = arith.constant 2 : i32
    %10 = vector.broadcast %c2_i32 : i32 to vector<8x8xi32>
    %11 = arith.select %8, %9, %10 : vector<8x8xi1>, vector<8x8xi32>
    %c0_3 = arith.constant 0 : index
    %c0_4 = arith.constant 0 : index
    %12 = vector.load %arg2[%c0_3, %c0_4] : memref<8x8xf32, #tpu.memory_space<vmem>>, vector<8x8xf32>
    %c0_5 = arith.constant 0 : index
    %c0_6 = arith.constant 0 : index
    %13 = vector.load %arg3[%c0_5, %c0_6] : memref<8x8xf32, #tpu.memory_space<vmem>>, vector<8x8xf32>
    %c0_7 = arith.constant 0 : index
    %c0_8 = arith.constant 0 : index
    %14 = vector.load %arg4[%c0_7, %c0_8] : memref<24x8xf32, #tpu.memory_space<vmem>>, vector<8x8xf32>
    %c8 = arith.constant 8 : index
    %c0_9 = arith.constant 0 : index
    %15 = vector.load %arg4[%c8, %c0_9] : memref<24x8xf32, #tpu.memory_space<vmem>>, vector<8x8xf32>
    %c16 = arith.constant 16 : index
    %c0_10 = arith.constant 0 : index
    %16 = vector.load %arg4[%c16, %c0_10] : memref<24x8xf32, #tpu.memory_space<vmem>>, vector<8x8xf32>
    %17 = arith.mulf %12, %13 : vector<8x8xf32>
    %18 = arith.mulf %14, %12 : vector<8x8xf32>
    %19 = arith.mulf %15, %12 : vector<8x8xf32>
    %20 = arith.mulf %16, %12 : vector<8x8xf32>
    %21 = arith.mulf %14, %13 : vector<8x8xf32>
    %22 = arith.mulf %15, %13 : vector<8x8xf32>
    %23 = arith.mulf %16, %13 : vector<8x8xf32>
    %c0_i32_11 = arith.constant 0 : i32
    %24 = vector.broadcast %c0_i32_11 : i32 to vector<8x8xi32>
    %25 = arith.cmpi eq, %11, %24 : vector<8x8xi32>
    %cst = arith.constant 0.000000e+00 : f32
    %26 = vector.broadcast %cst : f32 to vector<8x8xf32>
    %27 = arith.select %25, %17, %26 : vector<8x8xi1>, vector<8x8xf32>
    %28 = vector.shape_cast %27 : vector<8x8xf32> to vector<1x8x8xf32>
    %cst_12 = arith.constant dense<0.000000e+00> : vector<1xf32>
    %29 = vector.multi_reduction <add>, %28, %cst_12 [1, 2] : vector<1x8x8xf32> to vector<1xf32>
    %30 = vector.shape_cast %29 : vector<1xf32> to vector<1x1x1xf32>
    %31 = vector.extract %30[0, 0, 0] : f32 from vector<1x1x1xf32>
    %c0_13 = arith.constant 0 : index
    %c0_14 = arith.constant 0 : index
    %32 = vector.load %arg5[%c0_13, %c0_14] : memref<2x10xf32, #tpu.memory_space<vmem>>, vector<1x1xf32>
    %33 = vector.broadcast %31 : f32 to vector<1x1xf32>
    %34 = arith.addf %32, %33 : vector<1x1xf32>
    %c0_15 = arith.constant 0 : index
    %c0_16 = arith.constant 0 : index
    %35 = vector.load %arg5[%c0_15, %c0_16] : memref<2x10xf32, #tpu.memory_space<vmem>>, vector<1x1xf32>
    tpu.vector_store %arg5[%c0_15, %c0_16], %34 {strides = array<i32>} : memref<2x10xf32, #tpu.memory_space<vmem>>, vector<1x1xf32>,
    %cst_17 = arith.constant 0.000000e+00 : f32
    %36 = vector.broadcast %cst_17 : f32 to vector<8x8xf32>
    %37 = arith.select %25, %12, %36 : vector<8x8xi1>, vector<8x8xf32>
    %38 = vector.shape_cast %37 : vector<8x8xf32> to vector<1x8x8xf32>
    %cst_18 = arith.constant dense<0.000000e+00> : vector<1xf32>
    %39 = vector.multi_reduction <add>, %38, %cst_18 [1, 2] : vector<1x8x8xf32> to vector<1xf32>
    %40 = vector.shape_cast %39 : vector<1xf32> to vector<1x1x1xf32>
    %41 = vector.extract %40[0, 0, 0] : f32 from vector<1x1x1xf32>
    %c0_19 = arith.constant 0 : index
    %c1 = arith.constant 1 : index
    %42 = vector.load %arg5[%c0_19, %c1] : memref<2x10xf32, #tpu.memory_space<vmem>>, vector<1x1xf32>
    %43 = vector.broadcast %41 : f32 to vector<1x1xf32>
    %44 = arith.addf %42, %43 : vector<1x1xf32>
    %c0_20 = arith.constant 0 : index
    %c1_21 = arith.constant 1 : index
    %45 = vector.load %arg5[%c0_20, %c1_21] : memref<2x10xf32, #tpu.memory_space<vmem>>, vector<1x1xf32>
    tpu.vector_store %arg5[%c0_20, %c1_21], %44 {strides = array<i32>} : memref<2x10xf32, #tpu.memory_space<vmem>>, vector<1x1xf32>,
    %cst_22 = arith.constant 0.000000e+00 : f32
    %46 = vector.broadcast %cst_22 : f32 to vector<8x8xf32>
    %47 = arith.select %25, %13, %46 : vector<8x8xi1>, vector<8x8xf32>
    %48 = vector.shape_cast %47 : vector<8x8xf32> to vector<1x8x8xf32>
    %cst_23 = arith.constant dense<0.000000e+00> : vector<1xf32>
    %49 = vector.multi_reduction <add>, %48, %cst_23 [1, 2] : vector<1x8x8xf32> to vector<1xf32>
    %50 = vector.shape_cast %49 : vector<1xf32> to vector<1x1x1xf32>
    %51 = vector.extract %50[0, 0, 0] : f32 from vector<1x1x1xf32>
    %c0_24 = arith.constant 0 : index
    %c2 = arith.constant 2 : index
    %52 = vector.load %arg5[%c0_24, %c2] : memref<2x10xf32, #tpu.memory_space<vmem>>, vector<1x1xf32>
    %53 = vector.broadcast %51 : f32 to vector<1x1xf32>
    %54 = arith.addf %52, %53 : vector<1x1xf32>
    %c0_25 = arith.constant 0 : index
    %c2_26 = arith.constant 2 : index
    %55 = vector.load %arg5[%c0_25, %c2_26] : memref<2x10xf32, #tpu.memory_space<vmem>>, vector<1x1xf32>
    tpu.vector_store %arg5[%c0_25, %c2_26], %54 {strides = array<i32>} : memref<2x10xf32, #tpu.memory_space<vmem>>, vector<1x1xf32>,
    %cst_27 = arith.constant 0.000000e+00 : f32
    %56 = vector.broadcast %cst_27 : f32 to vector<8x8xf32>
    %57 = arith.select %25, %18, %56 : vector<8x8xi1>, vector<8x8xf32>
    %58 = vector.shape_cast %57 : vector<8x8xf32> to vector<1x8x8xf32>
    %cst_28 = arith.constant dense<0.000000e+00> : vector<1xf32>
    %59 = vector.multi_reduction <add>, %58, %cst_28 [1, 2] : vector<1x8x8xf32> to vector<1xf32>
    %60 = vector.shape_cast %59 : vector<1xf32> to vector<1x1x1xf32>
    %61 = vector.extract %60[0, 0, 0] : f32 from vector<1x1x1xf32>
    %c0_29 = arith.constant 0 : index
    %c3 = arith.constant 3 : index
    %62 = vector.load %arg5[%c0_29, %c3] : memref<2x10xf32, #tpu.memory_space<vmem>>, vector<1x1xf32>
    %63 = vector.broadcast %61 : f32 to vector<1x1xf32>
    %64 = arith.addf %62, %63 : vector<1x1xf32>
    %c0_30 = arith.constant 0 : index
    %c3_31 = arith.constant 3 : index
    %65 = vector.load %arg5[%c0_30, %c3_31] : memref<2x10xf32, #tpu.memory_space<vmem>>, vector<1x1xf32>
    tpu.vector_store %arg5[%c0_30, %c3_31], %64 {strides = array<i32>} : memref<2x10xf32, #tpu.memory_space<vmem>>, vector<1x1xf32>,
    %cst_32 = arith.constant 0.000000e+00 : f32
    %66 = vector.broadcast %cst_32 : f32 to vector<8x8xf32>
    %67 = arith.select %25, %19, %66 : vector<8x8xi1>, vector<8x8xf32>
    %68 = vector.shape_cast %67 : vector<8x8xf32> to vector<1x8x8xf32>
    %cst_33 = arith.constant dense<0.000000e+00> : vector<1xf32>
    %69 = vector.multi_reduction <add>, %68, %cst_33 [1, 2] : vector<1x8x8xf32> to vector<1xf32>
    %70 = vector.shape_cast %69 : vector<1xf32> to vector<1x1x1xf32>
    %71 = vector.extract %70[0, 0, 0] : f32 from vector<1x1x1xf32>
    %c0_34 = arith.constant 0 : index
    %c4 = arith.constant 4 : index
    %72 = vector.load %arg5[%c0_34, %c4] : memref<2x10xf32, #tpu.memory_space<vmem>>, vector<1x1xf32>
    %73 = vector.broadcast %71 : f32 to vector<1x1xf32>
    %74 = arith.addf %72, %73 : vector<1x1xf32>
    %c0_35 = arith.constant 0 : index
    %c4_36 = arith.constant 4 : index
    %75 = vector.load %arg5[%c0_35, %c4_36] : memref<2x10xf32, #tpu.memory_space<vmem>>, vector<1x1xf32>
    tpu.vector_store %arg5[%c0_35, %c4_36], %74 {strides = array<i32>} : memref<2x10xf32, #tpu.memory_space<vmem>>, vector<1x1xf32>,
    %cst_37 = arith.constant 0.000000e+00 : f32
    %76 = vector.broadcast %cst_37 : f32 to vector<8x8xf32>
    %77 = arith.select %25, %20, %76 : vector<8x8xi1>, vector<8x8xf32>
    %78 = vector.shape_cast %77 : vector<8x8xf32> to vector<1x8x8xf32>
    %cst_38 = arith.constant dense<0.000000e+00> : vector<1xf32>
    %79 = vector.multi_reduction <add>, %78, %cst_38 [1, 2] : vector<1x8x8xf32> to vector<1xf32>
    %80 = vector.shape_cast %79 : vector<1xf32> to vector<1x1x1xf32>
    %81 = vector.extract %80[0, 0, 0] : f32 from vector<1x1x1xf32>
    %c0_39 = arith.constant 0 : index
    %c5 = arith.constant 5 : index
    %82 = vector.load %arg5[%c0_39, %c5] : memref<2x10xf32, #tpu.memory_space<vmem>>, vector<1x1xf32>
    %83 = vector.broadcast %81 : f32 to vector<1x1xf32>
    %84 = arith.addf %82, %83 : vector<1x1xf32>
    %c0_40 = arith.constant 0 : index
    %c5_41 = arith.constant 5 : index
    %85 = vector.load %arg5[%c0_40, %c5_41] : memref<2x10xf32, #tpu.memory_space<vmem>>, vector<1x1xf32>
    tpu.vector_store %arg5[%c0_40, %c5_41], %84 {strides = array<i32>} : memref<2x10xf32, #tpu.memory_space<vmem>>, vector<1x1xf32>,
    %cst_42 = arith.constant 0.000000e+00 : f32
    %86 = vector.broadcast %cst_42 : f32 to vector<8x8xf32>
    %87 = arith.select %25, %21, %86 : vector<8x8xi1>, vector<8x8xf32>
    %88 = vector.shape_cast %87 : vector<8x8xf32> to vector<1x8x8xf32>
    %cst_43 = arith.constant dense<0.000000e+00> : vector<1xf32>
    %89 = vector.multi_reduction <add>, %88, %cst_43 [1, 2] : vector<1x8x8xf32> to vector<1xf32>
    %90 = vector.shape_cast %89 : vector<1xf32> to vector<1x1x1xf32>
    %91 = vector.extract %90[0, 0, 0] : f32 from vector<1x1x1xf32>
    %c0_44 = arith.constant 0 : index
    %c6 = arith.constant 6 : index
    %92 = vector.load %arg5[%c0_44, %c6] : memref<2x10xf32, #tpu.memory_space<vmem>>, vector<1x1xf32>
    %93 = vector.broadcast %91 : f32 to vector<1x1xf32>
    %94 = arith.addf %92, %93 : vector<1x1xf32>
    %c0_45 = arith.constant 0 : index
    %c6_46 = arith.constant 6 : index
    %95 = vector.load %arg5[%c0_45, %c6_46] : memref<2x10xf32, #tpu.memory_space<vmem>>, vector<1x1xf32>
    tpu.vector_store %arg5[%c0_45, %c6_46], %94 {strides = array<i32>} : memref<2x10xf32, #tpu.memory_space<vmem>>, vector<1x1xf32>,
    %cst_47 = arith.constant 0.000000e+00 : f32
    %96 = vector.broadcast %cst_47 : f32 to vector<8x8xf32>
    %97 = arith.select %25, %22, %96 : vector<8x8xi1>, vector<8x8xf32>
    %98 = vector.shape_cast %97 : vector<8x8xf32> to vector<1x8x8xf32>
    %cst_48 = arith.constant dense<0.000000e+00> : vector<1xf32>
    %99 = vector.multi_reduction <add>, %98, %cst_48 [1, 2] : vector<1x8x8xf32> to vector<1xf32>
    %100 = vector.shape_cast %99 : vector<1xf32> to vector<1x1x1xf32>
    %101 = vector.extract %100[0, 0, 0] : f32 from vector<1x1x1xf32>
    %c0_49 = arith.constant 0 : index
    %c7 = arith.constant 7 : index
    %102 = vector.load %arg5[%c0_49, %c7] : memref<2x10xf32, #tpu.memory_space<vmem>>, vector<1x1xf32>
    %103 = vector.broadcast %101 : f32 to vector<1x1xf32>
    %104 = arith.addf %102, %103 : vector<1x1xf32>
    %c0_50 = arith.constant 0 : index
    %c7_51 = arith.constant 7 : index
    %105 = vector.load %arg5[%c0_50, %c7_51] : memref<2x10xf32, #tpu.memory_space<vmem>>, vector<1x1xf32>
    tpu.vector_store %arg5[%c0_50, %c7_51], %104 {strides = array<i32>} : memref<2x10xf32, #tpu.memory_space<vmem>>, vector<1x1xf32>,
    %cst_52 = arith.constant 0.000000e+00 : f32
    %106 = vector.broadcast %cst_52 : f32 to vector<8x8xf32>
    %107 = arith.select %25, %23, %106 : vector<8x8xi1>, vector<8x8xf32>
    %108 = vector.shape_cast %107 : vector<8x8xf32> to vector<1x8x8xf32>
    %cst_53 = arith.constant dense<0.000000e+00> : vector<1xf32>
    %109 = vector.multi_reduction <add>, %108, %cst_53 [1, 2] : vector<1x8x8xf32> to vector<1xf32>
    %110 = vector.shape_cast %109 : vector<1xf32> to vector<1x1x1xf32>
    %111 = vector.extract %110[0, 0, 0] : f32 from vector<1x1x1xf32>
    %c0_54 = arith.constant 0 : index
    %c8_55 = arith.constant 8 : index
    %112 = vector.load %arg5[%c0_54, %c8_55] : memref<2x10xf32, #tpu.memory_space<vmem>>, vector<1x1xf32>
    %113 = vector.broadcast %111 : f32 to vector<1x1xf32>
    %114 = arith.addf %112, %113 : vector<1x1xf32>
    %c0_56 = arith.constant 0 : index
    %c8_57 = arith.constant 8 : index
    %115 = vector.load %arg5[%c0_56, %c8_57] : memref<2x10xf32, #tpu.memory_space<vmem>>, vector<1x1xf32>
    tpu.vector_store %arg5[%c0_56, %c8_57], %114 {strides = array<i32>} : memref<2x10xf32, #tpu.memory_space<vmem>>, vector<1x1xf32>,
    %c1_i32 = arith.constant 1 : i32
    %116 = vector.broadcast %c1_i32 : i32 to vector<8x8xi32>
    %117 = arith.cmpi eq, %11, %116 : vector<8x8xi32>
    %cst_58 = arith.constant 0.000000e+00 : f32
    %118 = vector.broadcast %cst_58 : f32 to vector<8x8xf32>
    %119 = arith.select %117, %17, %118 : vector<8x8xi1>, vector<8x8xf32>
    %120 = vector.shape_cast %119 : vector<8x8xf32> to vector<1x8x8xf32>
    %cst_59 = arith.constant dense<0.000000e+00> : vector<1xf32>
    %121 = vector.multi_reduction <add>, %120, %cst_59 [1, 2] : vector<1x8x8xf32> to vector<1xf32>
    %122 = vector.shape_cast %121 : vector<1xf32> to vector<1x1x1xf32>
    %123 = vector.extract %122[0, 0, 0] : f32 from vector<1x1x1xf32>
    %c1_60 = arith.constant 1 : index
    %c0_61 = arith.constant 0 : index
    %124 = vector.load %arg5[%c1_60, %c0_61] : memref<2x10xf32, #tpu.memory_space<vmem>>, vector<1x1xf32>
    %125 = vector.broadcast %123 : f32 to vector<1x1xf32>
    %126 = arith.addf %124, %125 : vector<1x1xf32>
    %c1_62 = arith.constant 1 : index
    %c0_63 = arith.constant 0 : index
    %127 = vector.load %arg5[%c1_62, %c0_63] : memref<2x10xf32, #tpu.memory_space<vmem>>, vector<1x1xf32>
    tpu.vector_store %arg5[%c1_62, %c0_63], %126 {strides = array<i32>} : memref<2x10xf32, #tpu.memory_space<vmem>>, vector<1x1xf32>,
    %cst_64 = arith.constant 0.000000e+00 : f32
    %128 = vector.broadcast %cst_64 : f32 to vector<8x8xf32>
    %129 = arith.select %117, %12, %128 : vector<8x8xi1>, vector<8x8xf32>
    %130 = vector.shape_cast %129 : vector<8x8xf32> to vector<1x8x8xf32>
    %cst_65 = arith.constant dense<0.000000e+00> : vector<1xf32>
    %131 = vector.multi_reduction <add>, %130, %cst_65 [1, 2] : vector<1x8x8xf32> to vector<1xf32>
    %132 = vector.shape_cast %131 : vector<1xf32> to vector<1x1x1xf32>
    %133 = vector.extract %132[0, 0, 0] : f32 from vector<1x1x1xf32>
    %c1_66 = arith.constant 1 : index
    %c1_67 = arith.constant 1 : index
    %134 = vector.load %arg5[%c1_66, %c1_67] : memref<2x10xf32, #tpu.memory_space<vmem>>, vector<1x1xf32>
    %135 = vector.broadcast %133 : f32 to vector<1x1xf32>
    %136 = arith.addf %134, %135 : vector<1x1xf32>
    %c1_68 = arith.constant 1 : index
    %c1_69 = arith.constant 1 : index
    %137 = vector.load %arg5[%c1_68, %c1_69] : memref<2x10xf32, #tpu.memory_space<vmem>>, vector<1x1xf32>
    tpu.vector_store %arg5[%c1_68, %c1_69], %136 {strides = array<i32>} : memref<2x10xf32, #tpu.memory_space<vmem>>, vector<1x1xf32>,
    %cst_70 = arith.constant 0.000000e+00 : f32
    %138 = vector.broadcast %cst_70 : f32 to vector<8x8xf32>
    %139 = arith.select %117, %13, %138 : vector<8x8xi1>, vector<8x8xf32>
    %140 = vector.shape_cast %139 : vector<8x8xf32> to vector<1x8x8xf32>
    %cst_71 = arith.constant dense<0.000000e+00> : vector<1xf32>
    %141 = vector.multi_reduction <add>, %140, %cst_71 [1, 2] : vector<1x8x8xf32> to vector<1xf32>
    %142 = vector.shape_cast %141 : vector<1xf32> to vector<1x1x1xf32>
    %143 = vector.extract %142[0, 0, 0] : f32 from vector<1x1x1xf32>
    %c1_72 = arith.constant 1 : index
    %c2_73 = arith.constant 2 : index
    %144 = vector.load %arg5[%c1_72, %c2_73] : memref<2x10xf32, #tpu.memory_space<vmem>>, vector<1x1xf32>
    %145 = vector.broadcast %143 : f32 to vector<1x1xf32>
    %146 = arith.addf %144, %145 : vector<1x1xf32>
    %c1_74 = arith.constant 1 : index
    %c2_75 = arith.constant 2 : index
    %147 = vector.load %arg5[%c1_74, %c2_75] : memref<2x10xf32, #tpu.memory_space<vmem>>, vector<1x1xf32>
    tpu.vector_store %arg5[%c1_74, %c2_75], %146 {strides = array<i32>} : memref<2x10xf32, #tpu.memory_space<vmem>>, vector<1x1xf32>,
    %cst_76 = arith.constant 0.000000e+00 : f32
    %148 = vector.broadcast %cst_76 : f32 to vector<8x8xf32>
    %149 = arith.select %117, %18, %148 : vector<8x8xi1>, vector<8x8xf32>
    %150 = vector.shape_cast %149 : vector<8x8xf32> to vector<1x8x8xf32>
    %cst_77 = arith.constant dense<0.000000e+00> : vector<1xf32>
    %151 = vector.multi_reduction <add>, %150, %cst_77 [1, 2] : vector<1x8x8xf32> to vector<1xf32>
    %152 = vector.shape_cast %151 : vector<1xf32> to vector<1x1x1xf32>
    %153 = vector.extract %152[0, 0, 0] : f32 from vector<1x1x1xf32>
    %c1_78 = arith.constant 1 : index
    %c3_79 = arith.constant 3 : index
    %154 = vector.load %arg5[%c1_78, %c3_79] : memref<2x10xf32, #tpu.memory_space<vmem>>, vector<1x1xf32>
    %155 = vector.broadcast %153 : f32 to vector<1x1xf32>
    %156 = arith.addf %154, %155 : vector<1x1xf32>
    %c1_80 = arith.constant 1 : index
    %c3_81 = arith.constant 3 : index
    %157 = vector.load %arg5[%c1_80, %c3_81] : memref<2x10xf32, #tpu.memory_space<vmem>>, vector<1x1xf32>
    tpu.vector_store %arg5[%c1_80, %c3_81], %156 {strides = array<i32>} : memref<2x10xf32, #tpu.memory_space<vmem>>, vector<1x1xf32>,
    %cst_82 = arith.constant 0.000000e+00 : f32
    %158 = vector.broadcast %cst_82 : f32 to vector<8x8xf32>
    %159 = arith.select %117, %19, %158 : vector<8x8xi1>, vector<8x8xf32>
    %160 = vector.shape_cast %159 : vector<8x8xf32> to vector<1x8x8xf32>
    %cst_83 = arith.constant dense<0.000000e+00> : vector<1xf32>
    %161 = vector.multi_reduction <add>, %160, %cst_83 [1, 2] : vector<1x8x8xf32> to vector<1xf32>
    %162 = vector.shape_cast %161 : vector<1xf32> to vector<1x1x1xf32>
    %163 = vector.extract %162[0, 0, 0] : f32 from vector<1x1x1xf32>
    %c1_84 = arith.constant 1 : index
    %c4_85 = arith.constant 4 : index
    %164 = vector.load %arg5[%c1_84, %c4_85] : memref<2x10xf32, #tpu.memory_space<vmem>>, vector<1x1xf32>
    %165 = vector.broadcast %163 : f32 to vector<1x1xf32>
    %166 = arith.addf %164, %165 : vector<1x1xf32>
    %c1_86 = arith.constant 1 : index
    %c4_87 = arith.constant 4 : index
    %167 = vector.load %arg5[%c1_86, %c4_87] : memref<2x10xf32, #tpu.memory_space<vmem>>, vector<1x1xf32>
    tpu.vector_store %arg5[%c1_86, %c4_87], %166 {strides = array<i32>} : memref<2x10xf32, #tpu.memory_space<vmem>>, vector<1x1xf32>,
    %cst_88 = arith.constant 0.000000e+00 : f32
    %168 = vector.broadcast %cst_88 : f32 to vector<8x8xf32>
    %169 = arith.select %117, %20, %168 : vector<8x8xi1>, vector<8x8xf32>
    %170 = vector.shape_cast %169 : vector<8x8xf32> to vector<1x8x8xf32>
    %cst_89 = arith.constant dense<0.000000e+00> : vector<1xf32>
    %171 = vector.multi_reduction <add>, %170, %cst_89 [1, 2] : vector<1x8x8xf32> to vector<1xf32>
    %172 = vector.shape_cast %171 : vector<1xf32> to vector<1x1x1xf32>
    %173 = vector.extract %172[0, 0, 0] : f32 from vector<1x1x1xf32>
    %c1_90 = arith.constant 1 : index
    %c5_91 = arith.constant 5 : index
    %174 = vector.load %arg5[%c1_90, %c5_91] : memref<2x10xf32, #tpu.memory_space<vmem>>, vector<1x1xf32>
    %175 = vector.broadcast %173 : f32 to vector<1x1xf32>
    %176 = arith.addf %174, %175 : vector<1x1xf32>
    %c1_92 = arith.constant 1 : index
    %c5_93 = arith.constant 5 : index
    %177 = vector.load %arg5[%c1_92, %c5_93] : memref<2x10xf32, #tpu.memory_space<vmem>>, vector<1x1xf32>
    tpu.vector_store %arg5[%c1_92, %c5_93], %176 {strides = array<i32>} : memref<2x10xf32, #tpu.memory_space<vmem>>, vector<1x1xf32>,
    %cst_94 = arith.constant 0.000000e+00 : f32
    %178 = vector.broadcast %cst_94 : f32 to vector<8x8xf32>
    %179 = arith.select %117, %21, %178 : vector<8x8xi1>, vector<8x8xf32>
    %180 = vector.shape_cast %179 : vector<8x8xf32> to vector<1x8x8xf32>
    %cst_95 = arith.constant dense<0.000000e+00> : vector<1xf32>
    %181 = vector.multi_reduction <add>, %180, %cst_95 [1, 2] : vector<1x8x8xf32> to vector<1xf32>
    %182 = vector.shape_cast %181 : vector<1xf32> to vector<1x1x1xf32>
    %183 = vector.extract %182[0, 0, 0] : f32 from vector<1x1x1xf32>
    %c1_96 = arith.constant 1 : index
    %c6_97 = arith.constant 6 : index
    %184 = vector.load %arg5[%c1_96, %c6_97] : memref<2x10xf32, #tpu.memory_space<vmem>>, vector<1x1xf32>
    %185 = vector.broadcast %183 : f32 to vector<1x1xf32>
    %186 = arith.addf %184, %185 : vector<1x1xf32>
    %c1_98 = arith.constant 1 : index
    %c6_99 = arith.constant 6 : index
    %187 = vector.load %arg5[%c1_98, %c6_99] : memref<2x10xf32, #tpu.memory_space<vmem>>, vector<1x1xf32>
    tpu.vector_store %arg5[%c1_98, %c6_99], %186 {strides = array<i32>} : memref<2x10xf32, #tpu.memory_space<vmem>>, vector<1x1xf32>,
    %cst_100 = arith.constant 0.000000e+00 : f32
    %188 = vector.broadcast %cst_100 : f32 to vector<8x8xf32>
    %189 = arith.select %117, %22, %188 : vector<8x8xi1>, vector<8x8xf32>
    %190 = vector.shape_cast %189 : vector<8x8xf32> to vector<1x8x8xf32>
    %cst_101 = arith.constant dense<0.000000e+00> : vector<1xf32>
    %191 = vector.multi_reduction <add>, %190, %cst_101 [1, 2] : vector<1x8x8xf32> to vector<1xf32>
    %192 = vector.shape_cast %191 : vector<1xf32> to vector<1x1x1xf32>
    %193 = vector.extract %192[0, 0, 0] : f32 from vector<1x1x1xf32>
    %c1_102 = arith.constant 1 : index
    %c7_103 = arith.constant 7 : index
    %194 = vector.load %arg5[%c1_102, %c7_103] : memref<2x10xf32, #tpu.memory_space<vmem>>, vector<1x1xf32>
    %195 = vector.broadcast %193 : f32 to vector<1x1xf32>
    %196 = arith.addf %194, %195 : vector<1x1xf32>
    %c1_104 = arith.constant 1 : index
    %c7_105 = arith.constant 7 : index
    %197 = vector.load %arg5[%c1_104, %c7_105] : memref<2x10xf32, #tpu.memory_space<vmem>>, vector<1x1xf32>
    tpu.vector_store %arg5[%c1_104, %c7_105], %196 {strides = array<i32>} : memref<2x10xf32, #tpu.memory_space<vmem>>, vector<1x1xf32>,
    %cst_106 = arith.constant 0.000000e+00 : f32
    %198 = vector.broadcast %cst_106 : f32 to vector<8x8xf32>
    %199 = arith.select %117, %23, %198 : vector<8x8xi1>, vector<8x8xf32>
    %200 = vector.shape_cast %199 : vector<8x8xf32> to vector<1x8x8xf32>
    %cst_107 = arith.constant dense<0.000000e+00> : vector<1xf32>
    %201 = vector.multi_reduction <add>, %200, %cst_107 [1, 2] : vector<1x8x8xf32> to vector<1xf32>
    %202 = vector.shape_cast %201 : vector<1xf32> to vector<1x1x1xf32>
    %203 = vector.extract %202[0, 0, 0] : f32 from vector<1x1x1xf32>
    %c1_108 = arith.constant 1 : index
    %c8_109 = arith.constant 8 : index
    %204 = vector.load %arg5[%c1_108, %c8_109] : memref<2x10xf32, #tpu.memory_space<vmem>>, vector<1x1xf32>
    %205 = vector.broadcast %203 : f32 to vector<1x1xf32>
    %206 = arith.addf %204, %205 : vector<1x1xf32>
    %c1_110 = arith.constant 1 : index
    %c8_111 = arith.constant 8 : index
    %207 = vector.load %arg5[%c1_110, %c8_111] : memref<2x10xf32, #tpu.memory_space<vmem>>, vector<1x1xf32>
    tpu.vector_store %arg5[%c1_110, %c8_111], %206 {strides = array<i32>} : memref<2x10xf32, #tpu.memory_space<vmem>>, vector<1x1xf32>,
    return
  }
  func.func @transform_0(%arg0: i32) -> (i32, i32) {
    %c0_i32 = arith.constant 0 : i32
    %c0_i32_0 = arith.constant 0 : i32
    return %c0_i32, %arg0 : i32, i32
  }
  func.func @transform_1(%arg0: i32) -> (i32, i32) {
    %c0_i32 = arith.constant 0 : i32
    %c0_i32_0 = arith.constant 0 : i32
    return %c0_i32, %arg0 : i32, i32
  }
  func.func @transform_2(%arg0: i32) -> (i32, i32) {
    %c0_i32 = arith.constant 0 : i32
    %c0_i32_0 = arith.constant 0 : i32
    return %c0_i32, %arg0 : i32, i32
  }
  func.func @transform_3(%arg0: i32) -> (i32, i32) {
    %c0_i32 = arith.constant 0 : i32
    %c0_i32_0 = arith.constant 0 : i32
    return %c0_i32, %arg0 : i32, i32
  }
  func.func @transform_4(%arg0: i32) -> (i32, i32) {
    %c0_i32 = arith.constant 0 : i32
    %c0_i32_0 = arith.constant 0 : i32
    %c0_i32_1 = arith.constant 0 : i32
    return %c0_i32, %c0_i32_0 : i32, i32
  }
}

</mosaic_0001>

<llo_original>
// kernel: tpu_custom_call.1
$region0: #{tpu_custom_call.1}
  #allocation0 [shape = 'u32[]', space=smem, size = 0x4, offset = 0x4, fixed_abs, tag = 'smem constant byte address 0x4 - core index']
  #allocation1 [shape = 'u32[144,128]{1,0:T(1,128)}', space=vmem, size = 0x12000, scoped, tag = 'internal scratch']
  %s0 = inlined_call_operand.vmem [shape: s32[8,8], index: 0, kind: input, shape index: {}]
  %s1 = inlined_call_operand.vmem [shape: f32[8,8], index: 1, kind: input, shape index: {}]
  %s2 = inlined_call_operand.vmem [shape: f32[8,8], index: 2, kind: input, shape index: {}]
  %s3 = inlined_call_operand.vmem [shape: f32[24,8], index: 3, kind: input, shape index: {}]
  %s4 = inlined_call_operand.hbm [shape: f32[2,10], index: 4, kind: output, shape index: {}]
  %s5 = sld [smem:[#allocation0]]
  $region30: #{tpu_custom_call.1} parent=0
    _
  %s7 = ssub.s32 1, %s5
  %s8 = scalar_select 0, %s7, %s5
  $region1: #{tpu_custom_call.1} parent=0
    #allocation2 [shape = 'u8[1024]{0}', space=vmem, size = 0x400, scoped, tag = 'output window, operand 0, single buffered']
    #allocation3 [shape = 's32[1]{0}', space=sflag, size = 0x4, scoped, tag = 'scoped memory for tpu_custom_call.1']
    %9 = vsyncpa [#allocation3], 0
    // Predicated region
    $region2: #{tpu_custom_call.1} parent=1 // pred_check
      _
    $region3: #{tpu_custom_call.1} parent=1 // pred_check_branch
      %11 = sbr.rel (0) target = $region5
    $region4: #{tpu_custom_call.1} parent=1 // pred_region
      _
    $region5: #{tpu_custom_call.1} parent=1 // pred_fallthru
      _
    // Predicated region
    $region6: #{tpu_custom_call.1} parent=1 // pred_check
      _
    $region7: #{tpu_custom_call.1} parent=1 // pred_check_branch
      %13 = sbr.rel (0) target = $region9
    $region8: #{tpu_custom_call.1} parent=1 // pred_region
      _
    $region9: #{tpu_custom_call.1} parent=1 // pred_fallthru
      _
    // Predicated region
    $region10: #{tpu_custom_call.1} parent=1 // pred_check
      _
    $region11: #{tpu_custom_call.1} parent=1 // pred_check_branch
      %15 = sbr.rel (0) target = $region13
    $region12: #{tpu_custom_call.1} parent=1 // pred_region
      _
    $region13: #{tpu_custom_call.1} parent=1 // pred_fallthru
      _
    // Predicated region
    $region14: #{tpu_custom_call.1} parent=1 // pred_check
      _
    $region15: #{tpu_custom_call.1} parent=1 // pred_check_branch
      %17 = sbr.rel (0) target = $region17
    $region16: #{tpu_custom_call.1} parent=1 // pred_region
      _
    $region17: #{tpu_custom_call.1} parent=1 // pred_fallthru
      _
    %p18 = scmp.eq.s32.totalorder 0, 0
    // Predicated region
    $region18: #{tpu_custom_call.1} parent=1 // pred_check
      %p19 = pneg %p18
    $region19: #{tpu_custom_call.1} parent=1 // pred_check_branch
      %21 = sbr.rel (%p19) target = $region21
    $region20: #{tpu_custom_call.1} parent=1 // pred_region
      %vm22 = vcmask 74752
      %23 = vst.msk [vmem:[#allocation2] sm:$0x3] %vm22, 0.0
    $region21: #{tpu_custom_call.1} parent=1 // pred_fallthru
      _
    %s24 = smul.u32 0, 8
    %v25 = vlaneseq
    %v26 = vand.u32 %v25, 127
    %v27 = vstv %s24
    %v28 = vadd.s32 %v27, %v26
    %vm29 = vcmp.lt.s32.totalorder %v28, 8
    %v30 = vld [vmem:[%s0] sm:$0xff]
    %v31 = vsel %vm29, %v30, 2
    %v32 = vld [vmem:[%s1] sm:$0xff]
    %v33 = vld [vmem:[%s2] sm:$0xff]
    %v34 = vld [vmem:[%s3] sm:$0xff]
    %v35 = vld [vmem:[%s3 + $0x8] sm:$0xff]
    %v36 = vld [vmem:[%s3 + $0x10] sm:$0xff]
    %v37 = vmul.f32 %v32, %v33
    %v38 = vmul.f32 %v34, %v32
    %v39 = vmul.f32 %v35, %v32
    %v40 = vmul.f32 %v36, %v32
    %v41 = vmul.f32 %v34, %v33
    %v42 = vmul.f32 %v35, %v33
    %v43 = vmul.f32 %v36, %v33
    %vm44 = vcmp.eq.s32.totalorder %v31, 0
    %v45 = vsel %vm44, %v37, 0.0
    %vm46 = vcmask 64512
    %v47 = vsel %vm46, %v45, 0.0
    %48 = vadd.xlane.f32.xlu0 %v47
    %v49 = vpop.xlane.xlu0 %48
    %v50 = vrot.slane %v49, 4
    %v51 = vadd.f32 %v49, %v50
    %v52 = vrot.slane %v51, 2
    %v53 = vadd.f32 %v51, %v52
    %v54 = vrot.slane %v53, 1
    %v55 = vadd.f32 %v53, %v54
    %s56 = vtos %v55
    %v57 = vld [vmem:[#allocation2] sm:$0x1]
    %v58 = vstv %s56
    %v59 = vadd.f32 %v57, %v58
    %vm60 = vcmask 0
    %61 = vst.msk [vmem:[#allocation2] sm:$0x1] %vm60, %v59
    %v62 = vsel %vm44, %v32, 0.0
    %v63 = vsel %vm46, %v62, 0.0
    %64 = vadd.xlane.f32.xlu0 %v63
    %v65 = vpop.xlane.xlu0 %64
    %v66 = vrot.slane %v65, 4
    %v67 = vadd.f32 %v65, %v66
    %v68 = vrot.slane %v67, 2
    %v69 = vadd.f32 %v67, %v68
    %v70 = vrot.slane %v69, 1
    %v71 = vadd.f32 %v69, %v70
    %s72 = vtos %v71
    %v73 = vld [vmem:[#allocation2] sm:$0x1]
    %v74 = vstv %s72
    %v75 = vadd.f32 %v73, %v74
    %vm76 = vcmask 8200
    %77 = vst.msk [vmem:[#allocation2] sm:$0x1] %vm76, %v75
    %v78 = vsel %vm44, %v33, 0.0
    %v79 = vsel %vm46, %v78, 0.0
    %80 = vadd.xlane.f32.xlu0 %v79
    %v81 = vpop.xlane.xlu0 %80
    %v82 = vrot.slane %v81, 4
    %v83 = vadd.f32 %v81, %v82
    %v84 = vrot.slane %v83, 2
    %v85 = vadd.f32 %v83, %v84
    %v86 = vrot.slane %v85, 1
    %v87 = vadd.f32 %v85, %v86
    %s88 = vtos %v87
    %v89 = vld [vmem:[#allocation2] sm:$0x1]
    %v90 = vstv %s88
    %v91 = vadd.f32 %v89, %v90
    %vm92 = vcmask 16400
    %93 = vst.msk [vmem:[#allocation2] sm:$0x1] %vm92, %v91
    %v94 = vsel %vm44, %v38, 0.0
    %v95 = vsel %vm46, %v94, 0.0
    %96 = vadd.xlane.f32.xlu0 %v95
    %v97 = vpop.xlane.xlu0 %96
    %v98 = vrot.slane %v97, 4
    %v99 = vadd.f32 %v97, %v98
    %v100 = vrot.slane %v99, 2
    %v101 = vadd.f32 %v99, %v100
    %v102 = vrot.slane %v101, 1
    %v103 = vadd.f32 %v101, %v102
    %s104 = vtos %v103
    %v105 = vld [vmem:[#allocation2] sm:$0x1]
    %v106 = vstv %s104
    %v107 = vadd.f32 %v105, %v106
    %vm108 = vcmask 24600
    %109 = vst.msk [vmem:[#allocation2] sm:$0x1] %vm108, %v107
    %v110 = vsel %vm44, %v39, 0.0
    %v111 = vsel %vm46, %v110, 0.0
    %112 = vadd.xlane.f32.xlu0 %v111
    %v113 = vpop.xlane.xlu0 %112
    %v114 = vrot.slane %v113, 4
    %v115 = vadd.f32 %v113, %v114
    %v116 = vrot.slane %v115, 2
    %v117 = vadd.f32 %v115, %v116
    %v118 = vrot.slane %v117, 1
    %v119 = vadd.f32 %v117, %v118
    %s120 = vtos %v119
    %v121 = vld [vmem:[#allocation2] sm:$0x1]
    %v122 = vstv %s120
    %v123 = vadd.f32 %v121, %v122
    %vm124 = vcmask 32800
    %125 = vst.msk [vmem:[#allocation2] sm:$0x1] %vm124, %v123
    %v126 = vsel %vm44, %v40, 0.0
    %v127 = vsel %vm46, %v126, 0.0
    %128 = vadd.xlane.f32.xlu0 %v127
    %v129 = vpop.xlane.xlu0 %128
    %v130 = vrot.slane %v129, 4
    %v131 = vadd.f32 %v129, %v130
    %v132 = vrot.slane %v131, 2
    %v133 = vadd.f32 %v131, %v132
    %v134 = vrot.slane %v133, 1
    %v135 = vadd.f32 %v133, %v134
    %s136 = vtos %v135
    %v137 = vld [vmem:[#allocation2] sm:$0x1]
    %v138 = vstv %s136
    %v139 = vadd.f32 %v137, %v138
    %vm140 = vcmask 41000
    %141 = vst.msk [vmem:[#allocation2] sm:$0x1] %vm140, %v139
    %v142 = vsel %vm44, %v41, 0.0
    %v143 = vsel %vm46, %v142, 0.0
    %144 = vadd.xlane.f32.xlu0 %v143
    %v145 = vpop.xlane.xlu0 %144
    %v146 = vrot.slane %v145, 4
    %v147 = vadd.f32 %v145, %v146
    %v148 = vrot.slane %v147, 2
    %v149 = vadd.f32 %v147, %v148
    %v150 = vrot.slane %v149, 1
    %v151 = vadd.f32 %v149, %v150
    %s152 = vtos %v151
    %v153 = vld [vmem:[#allocation2] sm:$0x1]
    %v154 = vstv %s152
    %v155 = vadd.f32 %v153, %v154
    %vm156 = vcmask 49200
    %157 = vst.msk [vmem:[#allocation2] sm:$0x1] %vm156, %v155
    %v158 = vsel %vm44, %v42, 0.0
    %v159 = vsel %vm46, %v158, 0.0
    %160 = vadd.xlane.f32.xlu0 %v159
    %v161 = vpop.xlane.xlu0 %160
    %v162 = vrot.slane %v161, 4
    %v163 = vadd.f32 %v161, %v162
    %v164 = vrot.slane %v163, 2
    %v165 = vadd.f32 %v163, %v164
    %v166 = vrot.slane %v165, 1
    %v167 = vadd.f32 %v165, %v166
    %s168 = vtos %v167
    %v169 = vld [vmem:[#allocation2] sm:$0x1]
    %v170 = vstv %s168
    %v171 = vadd.f32 %v169, %v170
    %vm172 = vcmask 57400
    %173 = vst.msk [vmem:[#allocation2] sm:$0x1] %vm172, %v171
    %v174 = vsel %vm44, %v43, 0.0
    %v175 = vsel %vm46, %v174, 0.0
    %176 = vadd.xlane.f32.xlu0 %v175
    %v177 = vpop.xlane.xlu0 %176
    %v178 = vrot.slane %v177, 4
    %v179 = vadd.f32 %v177, %v178
    %v180 = vrot.slane %v179, 2
    %v181 = vadd.f32 %v179, %v180
    %v182 = vrot.slane %v181, 1
    %v183 = vadd.f32 %v181, %v182
    %s184 = vtos %v183
    %v185 = vld [vmem:[#allocation2] sm:$0x1]
    %v186 = vstv %s184
    %v187 = vadd.f32 %v185, %v186
    %vm188 = vcmask 65600
    %189 = vst.msk [vmem:[#allocation2] sm:$0x1] %vm188, %v187
    %vm190 = vcmp.eq.s32.totalorder %v31, 1
    %v191 = vsel %vm190, %v37, 0.0
    %v192 = vsel %vm46, %v191, 0.0
    %193 = vadd.xlane.f32.xlu0 %v192
    %v194 = vpop.xlane.xlu0 %193
    %v195 = vrot.slane %v194, 4
    %v196 = vadd.f32 %v194, %v195
    %v197 = vrot.slane %v196, 2
    %v198 = vadd.f32 %v196, %v197
    %v199 = vrot.slane %v198, 1
    %v200 = vadd.f32 %v198, %v199
    %s201 = vtos %v200
    %v202 = vld [vmem:[#allocation2 + $0x1] sm:$0x1]
    %v203 = vstv %s201
    %v204 = vadd.f32 %v202, %v203
    %205 = vst.msk [vmem:[#allocation2 + $0x1] sm:$0x1] %vm60, %v204
    %v206 = vsel %vm190, %v32, 0.0
    %v207 = vsel %vm46, %v206, 0.0
    %208 = vadd.xlane.f32.xlu0 %v207
    %v209 = vpop.xlane.xlu0 %208
    %v210 = vrot.slane %v209, 4
    %v211 = vadd.f32 %v209, %v210
    %v212 = vrot.slane %v211, 2
    %v213 = vadd.f32 %v211, %v212
    %v214 = vrot.slane %v213, 1
    %v215 = vadd.f32 %v213, %v214
    %s216 = vtos %v215
    %v217 = vld [vmem:[#allocation2 + $0x1] sm:$0x1]
    %v218 = vstv %s216
    %v219 = vadd.f32 %v217, %v218
    %220 = vst.msk [vmem:[#allocation2 + $0x1] sm:$0x1] %vm76, %v219
    %v221 = vsel %vm190, %v33, 0.0
    %v222 = vsel %vm46, %v221, 0.0
    %223 = vadd.xlane.f32.xlu0 %v222
    %v224 = vpop.xlane.xlu0 %223
    %v225 = vrot.slane %v224, 4
    %v226 = vadd.f32 %v224, %v225
    %v227 = vrot.slane %v226, 2
    %v228 = vadd.f32 %v226, %v227
    %v229 = vrot.slane %v228, 1
    %v230 = vadd.f32 %v228, %v229
    %s231 = vtos %v230
    %v232 = vld [vmem:[#allocation2 + $0x1] sm:$0x1]
    %v233 = vstv %s231
    %v234 = vadd.f32 %v232, %v233
    %235 = vst.msk [vmem:[#allocation2 + $0x1] sm:$0x1] %vm92, %v234
    %v236 = vsel %vm190, %v38, 0.0
    %v237 = vsel %vm46, %v236, 0.0
    %238 = vadd.xlane.f32.xlu0 %v237
    %v239 = vpop.xlane.xlu0 %238
    %v240 = vrot.slane %v239, 4
    %v241 = vadd.f32 %v239, %v240
    %v242 = vrot.slane %v241, 2
    %v243 = vadd.f32 %v241, %v242
    %v244 = vrot.slane %v243, 1
    %v245 = vadd.f32 %v243, %v244
    %s246 = vtos %v245
    %v247 = vld [vmem:[#allocation2 + $0x1] sm:$0x1]
    %v248 = vstv %s246
    %v249 = vadd.f32 %v247, %v248
    %250 = vst.msk [vmem:[#allocation2 + $0x1] sm:$0x1] %vm108, %v249
    %v251 = vsel %vm190, %v39, 0.0
    %v252 = vsel %vm46, %v251, 0.0
    %253 = vadd.xlane.f32.xlu0 %v252
    %v254 = vpop.xlane.xlu0 %253
    %v255 = vrot.slane %v254, 4
    %v256 = vadd.f32 %v254, %v255
    %v257 = vrot.slane %v256, 2
    %v258 = vadd.f32 %v256, %v257
    %v259 = vrot.slane %v258, 1
    %v260 = vadd.f32 %v258, %v259
    %s261 = vtos %v260
    %v262 = vld [vmem:[#allocation2 + $0x1] sm:$0x1]
    %v263 = vstv %s261
    %v264 = vadd.f32 %v262, %v263
    %265 = vst.msk [vmem:[#allocation2 + $0x1] sm:$0x1] %vm124, %v264
    %v266 = vsel %vm190, %v40, 0.0
    %v267 = vsel %vm46, %v266, 0.0
    %268 = vadd.xlane.f32.xlu0 %v267
    %v269 = vpop.xlane.xlu0 %268
    %v270 = vrot.slane %v269, 4
    %v271 = vadd.f32 %v269, %v270
    %v272 = vrot.slane %v271, 2
    %v273 = vadd.f32 %v271, %v272
    %v274 = vrot.slane %v273, 1
    %v275 = vadd.f32 %v273, %v274
    %s276 = vtos %v275
    %v277 = vld [vmem:[#allocation2 + $0x1] sm:$0x1]
    %v278 = vstv %s276
    %v279 = vadd.f32 %v277, %v278
    %280 = vst.msk [vmem:[#allocation2 + $0x1] sm:$0x1] %vm140, %v279
    %v281 = vsel %vm190, %v41, 0.0
    %v282 = vsel %vm46, %v281, 0.0
    %283 = vadd.xlane.f32.xlu0 %v282
    %v284 = vpop.xlane.xlu0 %283
    %v285 = vrot.slane %v284, 4
    %v286 = vadd.f32 %v284, %v285
    %v287 = vrot.slane %v286, 2
    %v288 = vadd.f32 %v286, %v287
    %v289 = vrot.slane %v288, 1
    %v290 = vadd.f32 %v288, %v289
    %s291 = vtos %v290
    %v292 = vld [vmem:[#allocation2 + $0x1] sm:$0x1]
    %v293 = vstv %s291
    %v294 = vadd.f32 %v292, %v293
    %295 = vst.msk [vmem:[#allocation2 + $0x1] sm:$0x1] %vm156, %v294
    %v296 = vsel %vm190, %v42, 0.0
    %v297 = vsel %vm46, %v296, 0.0
    %298 = vadd.xlane.f32.xlu0 %v297
    %v299 = vpop.xlane.xlu0 %298
    %v300 = vrot.slane %v299, 4
    %v301 = vadd.f32 %v299, %v300
    %v302 = vrot.slane %v301, 2
    %v303 = vadd.f32 %v301, %v302
    %v304 = vrot.slane %v303, 1
    %v305 = vadd.f32 %v303, %v304
    %s306 = vtos %v305
    %v307 = vld [vmem:[#allocation2 + $0x1] sm:$0x1]
    %v308 = vstv %s306
    %v309 = vadd.f32 %v307, %v308
    %310 = vst.msk [vmem:[#allocation2 + $0x1] sm:$0x1] %vm172, %v309
    %v311 = vsel %vm190, %v43, 0.0
    %v312 = vsel %vm46, %v311, 0.0
    %313 = vadd.xlane.f32.xlu0 %v312
    %v314 = vpop.xlane.xlu0 %313
    %v315 = vrot.slane %v314, 4
    %v316 = vadd.f32 %v314, %v315
    %v317 = vrot.slane %v316, 2
    %v318 = vadd.f32 %v316, %v317
    %v319 = vrot.slane %v318, 1
    %v320 = vadd.f32 %v318, %v319
    %s321 = vtos %v320
    %v322 = vld [vmem:[#allocation2 + $0x1] sm:$0x1]
    %v323 = vstv %s321
    %v324 = vadd.f32 %v322, %v323
    %325 = vst.msk [vmem:[#allocation2 + $0x1] sm:$0x1] %vm188, %v324
    // Predicated region
    $region22: #{tpu_custom_call.1} parent=1 // pred_check
      _
    $region23: #{tpu_custom_call.1} parent=1 // pred_check_branch
      %327 = sbr.rel (0) target = $region25
    $region24: #{tpu_custom_call.1} parent=1 // pred_region
      %s329 = ssub.s32 32, 32
      %330 = vsyncadd [#allocation3], %s329
      %s332 = sshll.u32 [#allocation2], 4
      %s333 = int_to_ptr.vmem [resolvable:$true] %s332
      %335 = dma.vmem_to_hbm [thread:$0]  %s333, 32, %s4, [#allocation3]
    $region25: #{tpu_custom_call.1} parent=1 // pred_fallthru
      _
    // Predicated region
    $region26: #{tpu_custom_call.1} parent=1 // pred_check
      _
    $region27: #{tpu_custom_call.1} parent=1 // pred_check_branch
      %337 = sbr.rel (0) target = $region29
    $region28: #{tpu_custom_call.1} parent=1 // pred_region
      %338 = dma.done [#allocation3], 32
    $region29: #{tpu_custom_call.1} parent=1 // pred_fallthru
      _
    %339 = vsyncpa [#allocation3], 1

</llo_original>
